<compile_context>
chip_gen: v5e
topology: v5e:2x2
jax: 0.10.0
libtpu: 0.0.40
codegen_flags: <defaults>
</compile_context>

<pallas_src>
import functools

import jax
import jax.numpy as jnp
from jax.experimental import pallas as pl
from jax.experimental.pallas import tpu as pltpu


# ----------------------------------------------------------------------------
# Kernel
# ----------------------------------------------------------------------------
def _make_mlp_kernel(n_layers: int):
    """Fused feature-major MLP kernel.

    refs = (xT, w0, b0, ..., w_{n-1}, b_{n-1}, outT)
      xT   : (D0, Bt)        batch on the lane (minor) axis -> lane-dense
      w_i  : (Dout_i, Din_i) PyTorch layout, so layer is  y = W @ h + b
      b_i  : (Dout_i, 1)     broadcasts over the batch lanes
      outT : (D_last, Bt)    lane-dense, unmasked vst writeback
    """

    def kernel(*refs):
        o_ref = refs[-1]
        h = refs[0][...]                              # (D0, Bt)
        for i in range(n_layers):
            w = refs[1 + 2 * i][...]                  # (Dout_i, Din_i)
            b = refs[2 + 2 * i][...]                  # (Dout_i, 1)
            # MXU: M = Dout_i (small), K = Din_i, N = Bt (>=128, lane-dense).
            # Always accumulate in f32; bf16 inputs are fine on all chips.
            h = jnp.dot(w, h.astype(w.dtype),
                        preferred_element_type=jnp.float32) + b
            if i != n_layers - 1:
                h = jnp.tanh(h)                       # EUP, f32, full vregs
        o_ref[...] = h.astype(o_ref.dtype)

    return kernel


# ----------------------------------------------------------------------------
# Wrapper
# ----------------------------------------------------------------------------
def _mlp_forward_T(xT, params, *, batch_tile, tile_threshold_bytes):
    """Feature-major forward.  xT: (D0, B)  ->  (D_last, B)."""
    n_layers = len(params)
    D0, B = xT.shape
    D_last = params[-1][0].shape[0]
    flat = [t for wb in params for t in wb]
    kernel = _make_mlp_kernel(n_layers)

    x_bytes = B * D0 * xT.dtype.itemsize
    use_tiled = (B > batch_tile) and (x_bytes > tile_threshold_bytes)

    if not use_tiled:
        # Single fused full-block call.  At small/medium sizes one step beats
        # paying per-grid-step overhead + pipeline prologue/epilogue.
        in_specs = [pl.BlockSpec(xT.shape, lambda: (0, 0))]
        for w, b in params:
            in_specs.append(pl.BlockSpec(w.shape, lambda: (0, 0)))
            in_specs.append(pl.BlockSpec(b.shape, lambda: (0, 0)))
        return pl.pallas_call(
            kernel,
            out_shape=jax.ShapeDtypeStruct((D_last, B), xT.dtype),
            in_specs=in_specs,
            out_specs=pl.BlockSpec((D_last, B), lambda: (0, 0)),
        )(xT, *flat)

    # ---- Batch-tiled, lane-dense path -------------------------------------
    assert batch_tile % 128 == 0, "batch_tile must be lane-aligned (x128)"

    # Prefer >= 4 grid steps (2 TCs on v7x + double-buffering headroom) as
    # long as the tile stays reasonably large and lane-aligned.
    n_tiles = (B + batch_tile - 1) // batch_tile
    while n_tiles < 4 and batch_tile >= 1024 and (batch_tile // 2) % 128 == 0:
        batch_tile //= 2
        n_tiles = (B + batch_tile - 1) // batch_tile

    # Pad the batch (lane) axis so every grid step is a full, aligned tile.
    B_pad = n_tiles * batch_tile
    if B_pad != B:
        xT = jnp.pad(xT, ((0, 0), (0, B_pad - B)))

    in_specs = [pl.BlockSpec((D0, batch_tile), lambda i: (0, i))]
    for w, b in params:
        # Constant block index across the grid -> no re-DMA of weights/biases.
        in_specs.append(pl.BlockSpec(w.shape, lambda i: (0, 0)))
        in_specs.append(pl.BlockSpec(b.shape, lambda i: (0, 0)))

    outT = pl.pallas_call(
        kernel,
        out_shape=jax.ShapeDtypeStruct((D_last, B_pad), xT.dtype),
        grid=(n_tiles,),
        in_specs=in_specs,
        out_specs=pl.BlockSpec((D_last, batch_tile), lambda i: (0, i)),
        compiler_params=pltpu.CompilerParams(
            dimension_semantics=("parallel",)),
    )(xT, *flat)

    if B_pad != B:
        outT = outT[:, :B]
    return outT


@functools.partial(jax.jit,
                   static_argnames=("batch_tile", "tile_threshold_bytes"))
def net_forward(x, params_flat, batch_tile=4096,
                tile_threshold_bytes=4 * 1024 * 1024):
    """Public entry: x is (B, D0), returns (B, D_last) — same as PyTorch Net."""
    n_layers = len(params_flat) // 2
    params = [(params_flat[2 * i], params_flat[2 * i + 1])
              for i in range(n_layers)]
    # Transpose once in the wrapper so the kernel runs lane-dense on batch.
    outT = _mlp_forward_T(x.T, params, batch_tile=batch_tile,
                          tile_threshold_bytes=tile_threshold_bytes)
    return outT.T


def net_forward_ref(x, params_flat):
    """Pure-JAX reference (f32 math) for correctness checks."""
    n_layers = len(params_flat) // 2
    h = x.astype(jnp.float32)
    for i in range(n_layers):
        w = params_flat[2 * i].astype(jnp.float32)      # (Dout, Din)
        b = params_flat[2 * i + 1].astype(jnp.float32)  # (Dout, 1)
        h = h @ w.T + b.reshape(1, -1)
        if i != n_layers - 1:
            h = jnp.tanh(h)
    return h


def init_params(seq_net, key):
    """Shapes match nn.Linear: weight (out, in), bias 0 (as in the module).

    PyTorch default weight init is U(-1/sqrt(fan_in), 1/sqrt(fan_in)); RNG
    differs from PyTorch (forward-math parity only, not bitwise weights).
    """
    params = []
    for i in range(len(seq_net) - 1):
        fan_in, fan_out = seq_net[i], seq_net[i + 1]
        key, sub = jax.random.split(key)
        bound = 1.0 / float(fan_in) ** 0.5
        w = jax.random.uniform(sub, (fan_out, fan_in), jnp.float32,
                               -bound, bound)
        b = jnp.zeros((fan_out, 1), jnp.float32)
        params.append((w, b))
    return params


# ----------------------------------------------------------------------------
# Demo / self-test
# ----------------------------------------------------------------------------
if __name__ == "__main__":
    seq_net = [32, 64, 64, 16]          # MLP widths, as passed to Net(seq_net)
    key = jax.random.PRNGKey(0)
    key, k_small, k_big = jax.random.split(key, 3)

    params = init_params(seq_net, key)
    params_flat = tuple(t for wb in params for t in wb)

    # 1) Small batch -> single fused full-block call (f32).
    x = jax.random.normal(k_small, (8, seq_net[0]), jnp.float32)
    out = net_forward(x, params_flat)
    jax.block_until_ready(out)
    ref = net_forward_ref(x, params_flat)
    assert out.shape == (8, seq_net[-1])
    assert jnp.allclose(out, ref, atol=1e-5, rtol=1e-5)

    # 2) Non-tile-divisible batch, forced through the tiled + padded
    #    lane-dense path (threshold=0 forces tiling at this small demo size;
    #    B=1000 pads to 1024 -> grid of 4 tiles of 256).
    xb = jax.random.normal(k_big, (1000, seq_net[0]), jnp.float32)
    out_b = net_forward(xb, params_flat, batch_tile=256, tile_threshold_bytes=0)
    jax.block_until_ready(out_b)
    ref_b = net_forward_ref(xb, params_flat)
    assert out_b.shape == (1000, seq_net[-1])
    assert jnp.allclose(out_b, ref_b, atol=1e-5, rtol=1e-5)

    # 3) bf16 transfer/matmul path (halves HBM bytes on v6e/v7x); matmul still
    #    accumulates in f32, tanh runs in f32.  Compared against an f32-math
    #    reference evaluated on the same bf16-quantized inputs/params.
    xb16 = xb.astype(jnp.bfloat16)
    params16 = tuple(t.astype(jnp.bfloat16) for t in params_flat)
    out16 = net_forward(xb16, params16, batch_tile=256, tile_threshold_bytes=0)
    jax.block_until_ready(out16)
    ref16 = net_forward_ref(xb16, params16)
    assert out16.shape == (1000, seq_net[-1])
    assert jnp.allclose(out16.astype(jnp.float32), ref16, atol=3e-2, rtol=3e-2)

    print("KERNEL_OK")
</pallas_src>

<mosaic_0001>
module attributes {stable_mosaic.version = 11 : i64} {
  func.func @kernel(%arg0: memref<32x8xf32, #tpu.memory_space<vmem>>, %arg1: memref<64x32xf32, #tpu.memory_space<vmem>>, %arg2: memref<64x1xf32, #tpu.memory_space<vmem>>, %arg3: memref<64x64xf32, #tpu.memory_space<vmem>>, %arg4: memref<64x1xf32, #tpu.memory_space<vmem>>, %arg5: memref<16x64xf32, #tpu.memory_space<vmem>>, %arg6: memref<16x1xf32, #tpu.memory_space<vmem>>, %arg7: memref<16x8xf32, #tpu.memory_space<vmem>>) attributes {dimension_semantics = [], scalar_prefetch = 0 : i64, scratch_operands = 0 : i64, tpu.core_type = #tpu.core_type<tc>} {
    %c0 = arith.constant 0 : index
    %c0_0 = arith.constant 0 : index
    %0 = vector.load %arg0[%c0, %c0_0] : memref<32x8xf32, #tpu.memory_space<vmem>>, vector<32x8xf32>
    %c0_1 = arith.constant 0 : index
    %c0_2 = arith.constant 0 : index
    %1 = vector.load %arg1[%c0_1, %c0_2] : memref<64x32xf32, #tpu.memory_space<vmem>>, vector<64x32xf32>
    %c0_3 = arith.constant 0 : index
    %c0_4 = arith.constant 0 : index
    %2 = vector.load %arg2[%c0_3, %c0_4] : memref<64x1xf32, #tpu.memory_space<vmem>>, vector<64x1xf32>
    %cst = arith.constant dense<0.000000e+00> : vector<64x8xf32>
    %3 = tpu.matmul %1, %0, %cst {dimension_numbers = #tpu.dot_dimension_numbers<[1], [0], [0], [1], [0, 0, 1, 1], [], []>} : vector<64x32xf32>, vector<32x8xf32>, vector<64x8xf32> -> vector<64x8xf32>
    %4 = vector.broadcast %2 : vector<64x1xf32> to vector<64x8xf32>
    %5 = arith.addf %3, %4 : vector<64x8xf32>
    %6 = math.tanh %5 : vector<64x8xf32>
    %c0_5 = arith.constant 0 : index
    %c0_6 = arith.constant 0 : index
    %7 = vector.load %arg3[%c0_5, %c0_6] : memref<64x64xf32, #tpu.memory_space<vmem>>, vector<64x64xf32>
    %c0_7 = arith.constant 0 : index
    %c0_8 = arith.constant 0 : index
    %8 = vector.load %arg4[%c0_7, %c0_8] : memref<64x1xf32, #tpu.memory_space<vmem>>, vector<64x1xf32>
    %cst_9 = arith.constant dense<0.000000e+00> : vector<64x8xf32>
    %9 = tpu.matmul %7, %6, %cst_9 {dimension_numbers = #tpu.dot_dimension_numbers<[1], [0], [0], [1], [0, 0, 1, 1], [], []>} : vector<64x64xf32>, vector<64x8xf32>, vector<64x8xf32> -> vector<64x8xf32>
    %10 = vector.broadcast %8 : vector<64x1xf32> to vector<64x8xf32>
    %11 = arith.addf %9, %10 : vector<64x8xf32>
    %12 = math.tanh %11 : vector<64x8xf32>
    %c0_10 = arith.constant 0 : index
    %c0_11 = arith.constant 0 : index
    %13 = vector.load %arg5[%c0_10, %c0_11] : memref<16x64xf32, #tpu.memory_space<vmem>>, vector<16x64xf32>
    %c0_12 = arith.constant 0 : index
    %c0_13 = arith.constant 0 : index
    %14 = vector.load %arg6[%c0_12, %c0_13] : memref<16x1xf32, #tpu.memory_space<vmem>>, vector<16x1xf32>
    %cst_14 = arith.constant dense<0.000000e+00> : vector<16x8xf32>
    %15 = tpu.matmul %13, %12, %cst_14 {dimension_numbers = #tpu.dot_dimension_numbers<[1], [0], [0], [1], [0, 0, 1, 1], [], []>} : vector<16x64xf32>, vector<64x8xf32>, vector<16x8xf32> -> vector<16x8xf32>
    %16 = vector.broadcast %14 : vector<16x1xf32> to vector<16x8xf32>
    %17 = arith.addf %15, %16 : vector<16x8xf32>
    %c0_15 = arith.constant 0 : index
    %c0_16 = arith.constant 0 : index
    %18 = vector.load %arg7[%c0_15, %c0_16] : memref<16x8xf32, #tpu.memory_space<vmem>>, vector<16x8xf32>
    tpu.vector_store %arg7[%c0_15, %c0_16], %17 {strides = array<i32>} : memref<16x8xf32, #tpu.memory_space<vmem>>, vector<16x8xf32>,
    return
  }
}

</mosaic_0001>

<llo_original>
// kernel: net_forward.1
$region0: #{net_forward.1}
  #allocation0 [shape = 'u32[]', space=smem, size = 0x4, offset = 0x4, fixed_abs, tag = 'smem constant byte address 0x4 - core index']
  #allocation1 [shape = 'u32[72,128]{1,0:T(1,128)}', space=vmem, size = 0x9000, scoped, tag = 'internal scratch']
  %s0 = inlined_call_operand.vmem [shape: f32[32,8], index: 0, kind: input, shape index: {}]
  %s1 = inlined_call_operand.vmem [shape: f32[64,32], index: 1, kind: input, shape index: {}]
  %s2 = inlined_call_operand.vmem [shape: f32[64,1], index: 2, kind: input, shape index: {}]
  %s3 = inlined_call_operand.vmem [shape: f32[64,64], index: 3, kind: input, shape index: {}]
  %s4 = inlined_call_operand.vmem [shape: f32[64,1], index: 4, kind: input, shape index: {}]
  %s5 = inlined_call_operand.vmem [shape: f32[16,64], index: 5, kind: input, shape index: {}]
  %s6 = inlined_call_operand.vmem [shape: f32[16,1], index: 6, kind: input, shape index: {}]
  %s7 = inlined_call_operand.vmem [shape: f32[16,8], index: 7, kind: output, shape index: {}]
  %s8 = sld [smem:[#allocation0]]
  $region38: #{net_forward.1} parent=0
    _
  %s10 = ssub.s32 1, %s8
  %s11 = scalar_select 0, %s10, %s8
  // Predicated region
  $region2: #{net_forward.1} parent=0 // pred_check
    _
  $region3: #{net_forward.1} parent=0 // pred_check_branch
    %13 = sbr.rel (0) target = $region5
  $region4: #{net_forward.1} parent=0 // pred_region
    _
  $region5: #{net_forward.1} parent=0 // pred_fallthru
    _
  // Predicated region
  $region6: #{net_forward.1} parent=0 // pred_check
    _
  $region7: #{net_forward.1} parent=0 // pred_check_branch
    %15 = sbr.rel (0) target = $region9
  $region8: #{net_forward.1} parent=0 // pred_region
    _
  $region9: #{net_forward.1} parent=0 // pred_fallthru
    _
  // Predicated region
  $region10: #{net_forward.1} parent=0 // pred_check
    _
  $region11: #{net_forward.1} parent=0 // pred_check_branch
    %17 = sbr.rel (0) target = $region13
  $region12: #{net_forward.1} parent=0 // pred_region
    _
  $region13: #{net_forward.1} parent=0 // pred_fallthru
    _
  // Predicated region
  $region14: #{net_forward.1} parent=0 // pred_check
    _
  $region15: #{net_forward.1} parent=0 // pred_check_branch
    %19 = sbr.rel (0) target = $region17
  $region16: #{net_forward.1} parent=0 // pred_region
    _
  $region17: #{net_forward.1} parent=0 // pred_fallthru
    _
  // Predicated region
  $region18: #{net_forward.1} parent=0 // pred_check
    _
  $region19: #{net_forward.1} parent=0 // pred_check_branch
    %21 = sbr.rel (0) target = $region21
  $region20: #{net_forward.1} parent=0 // pred_region
    _
  $region21: #{net_forward.1} parent=0 // pred_fallthru
    _
  // Predicated region
  $region22: #{net_forward.1} parent=0 // pred_check
    _
  $region23: #{net_forward.1} parent=0 // pred_check_branch
    %23 = sbr.rel (0) target = $region25
  $region24: #{net_forward.1} parent=0 // pred_region
    _
  $region25: #{net_forward.1} parent=0 // pred_fallthru
    _
  // Predicated region
  $region26: #{net_forward.1} parent=0 // pred_check
    _
  $region27: #{net_forward.1} parent=0 // pred_check_branch
    %25 = sbr.rel (0) target = $region29
  $region28: #{net_forward.1} parent=0 // pred_region
    _
  $region29: #{net_forward.1} parent=0 // pred_fallthru
    _
  %v26 = vld [vmem:[%s0] sm:$0xff]
  %v27 = vld [vmem:[%s0 + $0x8] sm:$0xff]
  %v28 = vld [vmem:[%s0 + $0x10] sm:$0xff]
  %v29 = vld [vmem:[%s0 + $0x18] sm:$0xff]
  %v30 = vld [vmem:[%s1] sm:$0xff]
  %v31 = vld [vmem:[%s1 + $0x8] sm:$0xff]
  %v32 = vld [vmem:[%s1 + $0x10] sm:$0xff]
  %v33 = vld [vmem:[%s1 + $0x18] sm:$0xff]
  %v34 = vld [vmem:[%s1 + $0x20] sm:$0xff]
  %v35 = vld [vmem:[%s1 + $0x28] sm:$0xff]
  %v36 = vld [vmem:[%s1 + $0x30] sm:$0xff]
  %v37 = vld [vmem:[%s1 + $0x38] sm:$0xff]
  %v38 = vld [vmem:[%s2] sm:$0xff]
  %v39 = vld [vmem:[%s2 + $0x8] sm:$0xff]
  %v40 = vld [vmem:[%s2 + $0x10] sm:$0xff]
  %v41 = vld [vmem:[%s2 + $0x18] sm:$0xff]
  %v42 = vld [vmem:[%s2 + $0x20] sm:$0xff]
  %v43 = vld [vmem:[%s2 + $0x28] sm:$0xff]
  %v44 = vld [vmem:[%s2 + $0x30] sm:$0xff]
  %v45 = vld [vmem:[%s2 + $0x38] sm:$0xff]
  %47 = vset.pattern.permute.xlu0 0
  %48 = vperm.xlu0 %47, %v38
  %v49 = vpop.permute.xlu0 %48
  %52 = vset.pattern.permute.xlu0 0
  %53 = vperm.xlu0 %52, %v39
  %v54 = vpop.permute.xlu0 %53
  %57 = vset.pattern.permute.xlu0 0
  %58 = vperm.xlu0 %57, %v40
  %v59 = vpop.permute.xlu0 %58
  %62 = vset.pattern.permute.xlu0 0
  %63 = vperm.xlu0 %62, %v41
  %v64 = vpop.permute.xlu0 %63
  %67 = vset.pattern.permute.xlu0 0
  %68 = vperm.xlu0 %67, %v42
  %v69 = vpop.permute.xlu0 %68
  %72 = vset.pattern.permute.xlu0 0
  %73 = vperm.xlu0 %72, %v43
  %v74 = vpop.permute.xlu0 %73
  %77 = vset.pattern.permute.xlu0 0
  %78 = vperm.xlu0 %77, %v44
  %v79 = vpop.permute.xlu0 %78
  %82 = vset.pattern.permute.xlu0 0
  %83 = vperm.xlu0 %82, %v45
  %v84 = vpop.permute.xlu0 %83
  %vm86 = vcmask 261120
  %v88 = vsel %vm86, %v30, 0
  %v91 = vsel %vm86, %v31, 0
  %v94 = vsel %vm86, %v32, 0
  %v97 = vsel %vm86, %v33, 0
  %v100 = vsel %vm86, %v34, 0
  %v103 = vsel %vm86, %v35, 0
  %v106 = vsel %vm86, %v36, 0
  %v109 = vsel %vm86, %v37, 0
  %111 = vmatpush.msra.mxu0 0.0
  %112 = vmatpush.msra.mxu0 0.0
  %113 = vmatpush.msra.mxu0 0.0
  %114 = vmatpush.msra.mxu0 0.0
  %115 = vmatpush.msra.mxu0 0.0
  %116 = vmatpush.msra.mxu0 0.0
  %117 = vmatpush.msra.mxu0 0.0
  %118 = vmatpush.msra.mxu0 0.0
  %119 = vmatpush.msra.mxu0 0.0
  %120 = vmatpush.msra.mxu0 0.0
  %121 = vmatpush.msra.mxu0 0.0
  %122 = vmatpush.msra.mxu0 0.0
  %123 = vmatpush.msra.mxu0 %v29
  %124 = vmatpush.msra.mxu0 %v28
  %125 = vmatpush.msra.mxu0 %v27
  %126 = vmatpush.msra.mxu0 %v26
  %127 = vmatmul.f32.gmra.mxu0 %v88
  %v128 = vpop.f32.mrf.mxu0
  %v129 = vadd.f32 %v49, %v128
  %130 = vmatmul.f32.gmra.mxu0 %v91
  %v131 = vpop.f32.mrf.mxu0
  %v132 = vadd.f32 %v54, %v131
  %133 = vmatmul.f32.gmra.mxu0 %v94
  %v134 = vpop.f32.mrf.mxu0
  %v135 = vadd.f32 %v59, %v134
  %136 = vmatmul.f32.gmra.mxu0 %v97
  %v137 = vpop.f32.mrf.mxu0
  %v138 = vadd.f32 %v64, %v137
  %139 = vmatmul.f32.gmra.mxu0 %v100
  %v140 = vpop.f32.mrf.mxu0
  %v141 = vadd.f32 %v69, %v140
  %142 = vmatmul.f32.gmra.mxu0 %v103
  %v143 = vpop.f32.mrf.mxu0
  %v144 = vadd.f32 %v74, %v143
  %145 = vmatmul.f32.gmra.mxu0 %v106
  %v146 = vpop.f32.mrf.mxu0
  %v147 = vadd.f32 %v79, %v146
  %148 = vmatmul.f32.gmra.mxu0 %v109
  %v149 = vpop.f32.mrf.mxu0
  %v150 = vadd.f32 %v84, %v149
  %151 = vdwg.mxu0
  %v152 = vtanh.pop %v129
  %v153 = vtanh.pop %v132
  %v154 = vtanh.pop %v135
  %v155 = vtanh.pop %v138
  %v156 = vtanh.pop %v141
  %v157 = vtanh.pop %v144
  %v158 = vtanh.pop %v147
  %v159 = vtanh.pop %v150
  %v160 = vld [vmem:[%s3] sm:$0xff]
  %v161 = vld [vmem:[%s3 + $0x8] sm:$0xff]
  %v162 = vld [vmem:[%s3 + $0x10] sm:$0xff]
  %v163 = vld [vmem:[%s3 + $0x18] sm:$0xff]
  %v164 = vld [vmem:[%s3 + $0x20] sm:$0xff]
  %v165 = vld [vmem:[%s3 + $0x28] sm:$0xff]
  %v166 = vld [vmem:[%s3 + $0x30] sm:$0xff]
  %v167 = vld [vmem:[%s3 + $0x38] sm:$0xff]
  %v168 = vld [vmem:[%s4] sm:$0xff]
  %v169 = vld [vmem:[%s4 + $0x8] sm:$0xff]
  %v170 = vld [vmem:[%s4 + $0x10] sm:$0xff]
  %v171 = vld [vmem:[%s4 + $0x18] sm:$0xff]
  %v172 = vld [vmem:[%s4 + $0x20] sm:$0xff]
  %v173 = vld [vmem:[%s4 + $0x28] sm:$0xff]
  %v174 = vld [vmem:[%s4 + $0x30] sm:$0xff]
  %v175 = vld [vmem:[%s4 + $0x38] sm:$0xff]
  %177 = vset.pattern.permute.xlu0 0
  %178 = vperm.xlu0 %177, %v168
  %v179 = vpop.permute.xlu0 %178
  %182 = vset.pattern.permute.xlu0 0
  %183 = vperm.xlu0 %182, %v169
  %v184 = vpop.permute.xlu0 %183
  %187 = vset.pattern.permute.xlu0 0
  %188 = vperm.xlu0 %187, %v170
  %v189 = vpop.permute.xlu0 %188
  %192 = vset.pattern.permute.xlu0 0
  %193 = vperm.xlu0 %192, %v171
  %v194 = vpop.permute.xlu0 %193
  %197 = vset.pattern.permute.xlu0 0
  %198 = vperm.xlu0 %197, %v172
  %v199 = vpop.permute.xlu0 %198
  %202 = vset.pattern.permute.xlu0 0
  %203 = vperm.xlu0 %202, %v173
  %v204 = vpop.permute.xlu0 %203
  %207 = vset.pattern.permute.xlu0 0
  %208 = vperm.xlu0 %207, %v174
  %v209 = vpop.permute.xlu0 %208
  %212 = vset.pattern.permute.xlu0 0
  %213 = vperm.xlu0 %212, %v175
  %v214 = vpop.permute.xlu0 %213
  %vm216 = vcmask 523264
  %v218 = vsel %vm216, %v160, 0
  %v221 = vsel %vm216, %v161, 0
  %v224 = vsel %vm216, %v162, 0
  %v227 = vsel %vm216, %v163, 0
  %v230 = vsel %vm216, %v164, 0
  %v233 = vsel %vm216, %v165, 0
  %v236 = vsel %vm216, %v166, 0
  %v239 = vsel %vm216, %v167, 0
  %241 = vmatpush.msra.mxu0 0.0
  %242 = vmatpush.msra.mxu0 0.0
  %243 = vmatpush.msra.mxu0 0.0
  %244 = vmatpush.msra.mxu0 0.0
  %245 = vmatpush.msra.mxu0 0.0
  %246 = vmatpush.msra.mxu0 0.0
  %247 = vmatpush.msra.mxu0 0.0
  %248 = vmatpush.msra.mxu0 0.0
  %249 = vmatpush.msra.mxu0 %v159
  %250 = vmatpush.msra.mxu0 %v158
  %251 = vmatpush.msra.mxu0 %v157
  %252 = vmatpush.msra.mxu0 %v156
  %253 = vmatpush.msra.mxu0 %v155
  %254 = vmatpush.msra.mxu0 %v154
  %255 = vmatpush.msra.mxu0 %v153
  %256 = vmatpush.msra.mxu0 %v152
  %257 = vmatmul.f32.gmra.mxu0 %v218
  %v258 = vpop.f32.mrf.mxu0
  %v259 = vadd.f32 %v179, %v258
  %260 = vmatmul.f32.gmra.mxu0 %v221
  %v261 = vpop.f32.mrf.mxu0
  %v262 = vadd.f32 %v184, %v261
  %263 = vmatmul.f32.gmra.mxu0 %v224
  %v264 = vpop.f32.mrf.mxu0
  %v265 = vadd.f32 %v189, %v264
  %266 = vmatmul.f32.gmra.mxu0 %v227
  %v267 = vpop.f32.mrf.mxu0
  %v268 = vadd.f32 %v194, %v267
  %269 = vmatmul.f32.gmra.mxu0 %v230
  %v270 = vpop.f32.mrf.mxu0
  %v271 = vadd.f32 %v199, %v270
  %272 = vmatmul.f32.gmra.mxu0 %v233
  %v273 = vpop.f32.mrf.mxu0
  %v274 = vadd.f32 %v204, %v273
  %275 = vmatmul.f32.gmra.mxu0 %v236
  %v276 = vpop.f32.mrf.mxu0
  %v277 = vadd.f32 %v209, %v276
  %278 = vmatmul.f32.gmra.mxu0 %v239
  %v279 = vpop.f32.mrf.mxu0
  %v280 = vadd.f32 %v214, %v279
  %281 = vdwg.mxu0
  %v282 = vtanh.pop %v259
  %v283 = vtanh.pop %v262
  %v284 = vtanh.pop %v265
  %v285 = vtanh.pop %v268
  %v286 = vtanh.pop %v271
  %v287 = vtanh.pop %v274
  %v288 = vtanh.pop %v277
  %v289 = vtanh.pop %v280
  %v290 = vld [vmem:[%s5] sm:$0xff]
  %v291 = vld [vmem:[%s5 + $0x8] sm:$0xff]
  %v292 = vld [vmem:[%s6] sm:$0xff]
  %v293 = vld [vmem:[%s6 + $0x8] sm:$0xff]
  %295 = vset.pattern.permute.xlu0 0
  %296 = vperm.xlu0 %295, %v292
  %v297 = vpop.permute.xlu0 %296
  %300 = vset.pattern.permute.xlu0 0
  %301 = vperm.xlu0 %300, %v293
  %v302 = vpop.permute.xlu0 %301
  %v305 = vsel %vm216, %v290, 0
  %v308 = vsel %vm216, %v291, 0
  %310 = vmatpush.msra.mxu0 0.0
  %311 = vmatpush.msra.mxu0 0.0
  %312 = vmatpush.msra.mxu0 0.0
  %313 = vmatpush.msra.mxu0 0.0
  %314 = vmatpush.msra.mxu0 0.0
  %315 = vmatpush.msra.mxu0 0.0
  %316 = vmatpush.msra.mxu0 0.0
  %317 = vmatpush.msra.mxu0 0.0
  %318 = vmatpush.msra.mxu0 %v289
  %319 = vmatpush.msra.mxu0 %v288
  %320 = vmatpush.msra.mxu0 %v287
  %321 = vmatpush.msra.mxu0 %v286
  %322 = vmatpush.msra.mxu0 %v285
  %323 = vmatpush.msra.mxu0 %v284
  %324 = vmatpush.msra.mxu0 %v283
  %325 = vmatpush.msra.mxu0 %v282
  %326 = vmatmul.f32.gmra.mxu0 %v305
  %v327 = vpop.f32.mrf.mxu0
  %v328 = vadd.f32 %v297, %v327
  %329 = vmatmul.f32.gmra.mxu0 %v308
  %v330 = vpop.f32.mrf.mxu0
  %v331 = vadd.f32 %v302, %v330
  %332 = vdwg.mxu0
  %vm333 = vcmask 64512
  %334 = vst.msk [vmem:[%s7] sm:$0xff] %vm333, %v328
  %335 = vst.msk [vmem:[%s7 + $0x8] sm:$0xff] %vm333, %v331
  // Predicated region
  $region30: #{net_forward.1} parent=0 // pred_check
    _
  $region31: #{net_forward.1} parent=0 // pred_check_branch
    %337 = sbr.rel (0) target = $region33
  $region32: #{net_forward.1} parent=0 // pred_region
    _
  $region33: #{net_forward.1} parent=0 // pred_fallthru
    _
  // Predicated region
  $region34: #{net_forward.1} parent=0 // pred_check
    _
  $region35: #{net_forward.1} parent=0 // pred_check_branch
    %339 = sbr.rel (0) target = $region37
  $region36: #{net_forward.1} parent=0 // pred_region
    _
  $region37: #{net_forward.1} parent=0 // pred_fallthru
    _

</llo_original>
